<compile_context>
chip_gen: v5e
topology: v5e:2x2
jax: 0.10.0
libtpu: 0.0.40
codegen_flags: <defaults>
</compile_context>

<pallas_src>
import jax
import jax.numpy as jnp
from jax.experimental import pallas as pl
from jax.experimental.pallas import tpu as pltpu


def _vdc_kernel(xl_ref, xr_ref, wc_ref, w2l_ref, w2r_ref, b_ref, o_ref):
    # xl/xr  : [1, C, V]   one batch element, channels-first (PyTorch NCL)
    # wc     : [1, C]      Conv1d(C, 1, kernel_size=1) weight
    # w2l/w2r: [V, NOUT]   left/right halves of Linear(2V, NOUT).weight^T (concat folded away)
    # b      : [1, NOUT]   conv_bias * rowsum(W_lin) + lin_bias   (both biases folded)
    # o      : [1, 1, NOUT]
    xl = xl_ref[0]                                                         # [C, V]
    xr = xr_ref[0]                                                         # [C, V]
    wc = wc_ref[...]                                                       # [1, C]
    # 1x1 Conv1d == per-vertex channel contraction (MXU dot)
    feat_l = jnp.dot(wc, xl, preferred_element_type=jnp.float32)           # [1, V]
    feat_r = jnp.dot(wc, xr, preferred_element_type=jnp.float32)           # [1, V]
    # Flatten + Linear(2V -> NOUT); the concat(dim=2) is realized as split-weight matmuls
    out = (jnp.dot(feat_l, w2l_ref[...], preferred_element_type=jnp.float32)
           + jnp.dot(feat_r, w2r_ref[...], preferred_element_type=jnp.float32)
           + b_ref[...])                                                   # [1, NOUT]
    o_ref[0] = out.astype(o_ref.dtype)


def vertex_disease_classifiers(x_l, x_r, params):
    """Fused forward pass. x_l / x_r: [B, C, V] float32 (PyTorch NCL layout)."""
    B, C, V = x_l.shape
    assert x_r.shape == (B, C, V)
    conv_w = params["conv_w"]            # [1, C, 1]
    conv_b = params["conv_b"]            # [1]
    lin_w = params["lin_w"]              # [NOUT, 2V]
    lin_b = params["lin_b"]              # [NOUT]
    nout, two_v = lin_w.shape
    assert two_v == 2 * V, f"Linear expects {two_v} in-features, got 2*V={2 * V}"

    # Parameter folding (host side, once per call): split linear weight, fuse biases.
    wc = conv_w[:, :, 0]                                   # [1, C]
    w_t = lin_w.T                                          # [2V, NOUT]
    w2l = w_t[:V]                                          # [V, NOUT]  (left hemisphere)
    w2r = w_t[V:]                                          # [V, NOUT]  (right hemisphere)
    bias = (conv_b[0] * jnp.sum(w_t, axis=0) + lin_b).reshape(1, nout)

    # Advisory cost info for XLA's scheduler.
    flops = B * (4 * C * V + 4 * V * nout)
    bytes_accessed = 4 * (2 * B * C * V + C + 2 * V * nout + nout + B * nout)

    out = pl.pallas_call(
        _vdc_kernel,
        out_shape=jax.ShapeDtypeStruct((B, 1, nout), jnp.float32),
        grid_spec=pltpu.PrefetchScalarGridSpec(
            num_scalar_prefetch=0,
            grid=(B,),
            in_specs=[
                pl.BlockSpec((1, C, V), lambda b: (b, 0, 0)),    # x_l batch tile
                pl.BlockSpec((1, C, V), lambda b: (b, 0, 0)),    # x_r batch tile
                pl.BlockSpec((1, C), lambda b: (0, 0)),          # conv weight (resident)
                pl.BlockSpec((V, nout), lambda b: (0, 0)),       # linear W, left half
                pl.BlockSpec((V, nout), lambda b: (0, 0)),       # linear W, right half
                pl.BlockSpec((1, nout), lambda b: (0, 0)),       # fused bias
            ],
            out_specs=pl.BlockSpec((1, 1, nout), lambda b: (b, 0, 0)),
        ),
        compiler_params=pltpu.CompilerParams(
            dimension_semantics=("parallel",),       # batch axis -> both TCs on v7x
            vmem_limit_bytes=16 * 1024 * 1024,       # per-step footprint is <1 MiB
        ),
        cost_estimate=pl.CostEstimate(
            flops=flops, transcendentals=0, bytes_accessed=bytes_accessed),
    )(x_l, x_r, wc, w2l, w2r, bias)
    return out[:, 0, :]                                        # [B, NOUT]


# ----------------------------------------------------------------------------
# Pure-JAX reference (mirrors the PyTorch forward literally) and parameter init
# ----------------------------------------------------------------------------
def reference_forward(x_l, x_r, params):
    x = jnp.concatenate([x_l, x_r], axis=2)                                   # [B, C, 2V]
    y = jnp.einsum("bcv,c->bv", x, params["conv_w"][0, :, 0],
                   precision=jax.lax.Precision.HIGHEST) + params["conv_b"][0]  # [B, 2V]
    return jnp.dot(y, params["lin_w"].T,
                   precision=jax.lax.Precision.HIGHEST) + params["lin_b"]      # [B, NOUT]


def init_params(key, in_features, n_feat_total=324, n_out=2):
    # PyTorch-style uniform(-1/sqrt(fan_in), 1/sqrt(fan_in)) init, deterministic.
    k1, k2, k3, k4 = jax.random.split(key, 4)
    cb = 1.0 / float(in_features) ** 0.5
    lb = 1.0 / float(n_feat_total) ** 0.5
    return {
        "conv_w": jax.random.uniform(k1, (1, in_features, 1), jnp.float32, -cb, cb),
        "conv_b": jax.random.uniform(k2, (1,), jnp.float32, -cb, cb),
        "lin_w": jax.random.uniform(k3, (n_out, n_feat_total), jnp.float32, -lb, lb),
        "lin_b": jax.random.uniform(k4, (n_out,), jnp.float32, -lb, lb),
    }


# ----------------------------------------------------------------------------
if __name__ == "__main__":
    key = jax.random.PRNGKey(0)
    kp, kl, kr = jax.random.split(key, 3)

    # Linear(324, 2) fixes 2*V == 324 -> V == 162 vertices per hemisphere.
    B, C, V = 2, 32, 162
    params = init_params(kp, C)
    x_l = jax.random.normal(kl, (B, C, V), jnp.float32)
    x_r = jax.random.normal(kr, (B, C, V), jnp.float32)

    fwd = jax.jit(vertex_disease_classifiers)
    pred = fwd(x_l, x_r, params)
    jax.block_until_ready(pred)
    assert pred.shape == (B, 2) and pred.dtype == jnp.float32

    ref = reference_forward(x_l, x_r, params)
    assert jnp.allclose(pred, ref, rtol=1e-3, atol=1e-3), (pred, ref)
    print("KERNEL_OK")
</pallas_src>

<mosaic_0001>
module attributes {stable_mosaic.version = 11 : i64} {
  func.func @_vdc_kernel(%arg0: i32, %arg1: memref<1x32x162xf32, #tpu.memory_space<vmem>>, %arg2: memref<1x32x162xf32, #tpu.memory_space<vmem>>, %arg3: memref<1x32xf32, #tpu.memory_space<vmem>>, %arg4: memref<162x2xf32, #tpu.memory_space<vmem>>, %arg5: memref<162x2xf32, #tpu.memory_space<vmem>>, %arg6: memref<1x2xf32, #tpu.memory_space<vmem>>, %arg7: memref<1x1x2xf32, #tpu.memory_space<vmem>>) attributes {dimension_semantics = [#tpu.dimension_semantics<parallel>], iteration_bounds = array<i64: 2>, scalar_prefetch = 0 : i64, scratch_operands = 0 : i64, tpu.core_type = #tpu.core_type<tc>, window_params = [{transform_indices = @transform_0, window_bounds = array<i64: 1, 32, 162>}, {transform_indices = @transform_1, window_bounds = array<i64: 1, 32, 162>}, {pipeline_mode = #tpu.pipeline_mode<synchronous>, transform_indices = @transform_2, window_bounds = array<i64: 1, 32>}, {pipeline_mode = #tpu.pipeline_mode<synchronous>, transform_indices = @transform_3, window_bounds = array<i64: 162, 2>}, {pipeline_mode = #tpu.pipeline_mode<synchronous>, transform_indices = @transform_4, window_bounds = array<i64: 162, 2>}, {pipeline_mode = #tpu.pipeline_mode<synchronous>, transform_indices = @transform_5, window_bounds = array<i64: 1, 2>}, {transform_indices = @transform_6, window_bounds = array<i64: 1, 1, 2>}]} {
    %c0 = arith.constant 0 : index
    %c0_0 = arith.constant 0 : index
    %c0_1 = arith.constant 0 : index
    %0 = vector.load %arg1[%c0, %c0_0, %c0_1] : memref<1x32x162xf32, #tpu.memory_space<vmem>>, vector<1x32x162xf32>
    %1 = vector.shape_cast %0 : vector<1x32x162xf32> to vector<32x162xf32>
    %c0_2 = arith.constant 0 : index
    %c0_3 = arith.constant 0 : index
    %c0_4 = arith.constant 0 : index
    %2 = vector.load %arg2[%c0_2, %c0_3, %c0_4] : memref<1x32x162xf32, #tpu.memory_space<vmem>>, vector<1x32x162xf32>
    %3 = vector.shape_cast %2 : vector<1x32x162xf32> to vector<32x162xf32>
    %c0_5 = arith.constant 0 : index
    %c0_6 = arith.constant 0 : index
    %4 = vector.load %arg3[%c0_5, %c0_6] : memref<1x32xf32, #tpu.memory_space<vmem>>, vector<1x32xf32>
    %cst = arith.constant dense<0.000000e+00> : vector<1x162xf32>
    %5 = tpu.matmul %4, %1, %cst {dimension_numbers = #tpu.dot_dimension_numbers<[1], [0], [0], [1], [0, 0, 1, 1], [], []>} : vector<1x32xf32>, vector<32x162xf32>, vector<1x162xf32> -> vector<1x162xf32>
    %cst_7 = arith.constant dense<0.000000e+00> : vector<1x162xf32>
    %6 = tpu.matmul %4, %3, %cst_7 {dimension_numbers = #tpu.dot_dimension_numbers<[1], [0], [0], [1], [0, 0, 1, 1], [], []>} : vector<1x32xf32>, vector<32x162xf32>, vector<1x162xf32> -> vector<1x162xf32>
    %c0_8 = arith.constant 0 : index
    %c0_9 = arith.constant 0 : index
    %7 = vector.load %arg4[%c0_8, %c0_9] : memref<162x2xf32, #tpu.memory_space<vmem>>, vector<162x2xf32>
    %cst_10 = arith.constant dense<0.000000e+00> : vector<1x2xf32>
    %8 = tpu.matmul %5, %7, %cst_10 {dimension_numbers = #tpu.dot_dimension_numbers<[1], [0], [0], [1], [0, 0, 1, 1], [], []>} : vector<1x162xf32>, vector<162x2xf32>, vector<1x2xf32> -> vector<1x2xf32>
    %c0_11 = arith.constant 0 : index
    %c0_12 = arith.constant 0 : index
    %9 = vector.load %arg5[%c0_11, %c0_12] : memref<162x2xf32, #tpu.memory_space<vmem>>, vector<162x2xf32>
    %cst_13 = arith.constant dense<0.000000e+00> : vector<1x2xf32>
    %10 = tpu.matmul %6, %9, %cst_13 {dimension_numbers = #tpu.dot_dimension_numbers<[1], [0], [0], [1], [0, 0, 1, 1], [], []>} : vector<1x162xf32>, vector<162x2xf32>, vector<1x2xf32> -> vector<1x2xf32>
    %11 = arith.addf %8, %10 : vector<1x2xf32>
    %c0_14 = arith.constant 0 : index
    %c0_15 = arith.constant 0 : index
    %12 = vector.load %arg6[%c0_14, %c0_15] : memref<1x2xf32, #tpu.memory_space<vmem>>, vector<1x2xf32>
    %13 = arith.addf %11, %12 : vector<1x2xf32>
    %c0_16 = arith.constant 0 : index
    %c0_17 = arith.constant 0 : index
    %c0_18 = arith.constant 0 : index
    %14 = vector.load %arg7[%c0_16, %c0_17, %c0_18] : memref<1x1x2xf32, #tpu.memory_space<vmem>>, vector<1x1x2xf32>
    %15 = vector.shape_cast %14 : vector<1x1x2xf32> to vector<1x2xf32>
    %16 = vector.shape_cast %13 : vector<1x2xf32> to vector<1x1x2xf32>
    tpu.vector_store %arg7[%c0_16, %c0_17, %c0_18], %16 {strides = array<i32>} : memref<1x1x2xf32, #tpu.memory_space<vmem>>, vector<1x1x2xf32>,
    return
  }
  func.func @transform_0(%arg0: i32) -> (i32, i32, i32) {
    %c0_i32 = arith.constant 0 : i32
    %c0_i32_0 = arith.constant 0 : i32
    %c0_i32_1 = arith.constant 0 : i32
    return %arg0, %c0_i32, %c0_i32_0 : i32, i32, i32
  }
  func.func @transform_1(%arg0: i32) -> (i32, i32, i32) {
    %c0_i32 = arith.constant 0 : i32
    %c0_i32_0 = arith.constant 0 : i32
    %c0_i32_1 = arith.constant 0 : i32
    return %arg0, %c0_i32, %c0_i32_0 : i32, i32, i32
  }
  func.func @transform_2(%arg0: i32) -> (i32, i32) {
    %c0_i32 = arith.constant 0 : i32
    %c0_i32_0 = arith.constant 0 : i32
    %c0_i32_1 = arith.constant 0 : i32
    return %c0_i32, %c0_i32_0 : i32, i32
  }
  func.func @transform_3(%arg0: i32) -> (i32, i32) {
    %c0_i32 = arith.constant 0 : i32
    %c0_i32_0 = arith.constant 0 : i32
    %c0_i32_1 = arith.constant 0 : i32
    return %c0_i32, %c0_i32_0 : i32, i32
  }
  func.func @transform_4(%arg0: i32) -> (i32, i32) {
    %c0_i32 = arith.constant 0 : i32
    %c0_i32_0 = arith.constant 0 : i32
    %c0_i32_1 = arith.constant 0 : i32
    return %c0_i32, %c0_i32_0 : i32, i32
  }
  func.func @transform_5(%arg0: i32) -> (i32, i32) {
    %c0_i32 = arith.constant 0 : i32
    %c0_i32_0 = arith.constant 0 : i32
    %c0_i32_1 = arith.constant 0 : i32
    return %c0_i32, %c0_i32_0 : i32, i32
  }
  func.func @transform_6(%arg0: i32) -> (i32, i32, i32) {
    %c0_i32 = arith.constant 0 : i32
    %c0_i32_0 = arith.constant 0 : i32
    %c0_i32_1 = arith.constant 0 : i32
    return %arg0, %c0_i32, %c0_i32_0 : i32, i32, i32
  }
}

</mosaic_0001>

<llo_original>
// kernel: vertex_disease_classifiers.1
$region0: #{vertex_disease_classifiers.1}
  #allocation0 [shape = 'u32[]', space=smem, size = 0x4, offset = 0x4, fixed_abs, tag = 'smem constant byte address 0x4 - core index']
  #allocation1 [shape = 'u32[72,128]{1,0:T(1,128)}', space=vmem, size = 0x9000, scoped, tag = 'internal scratch']
  %s0 = inlined_call_operand.vmem [shape: f32[2,32,162], index: 0, kind: input, shape index: {}]
  %s1 = inlined_call_operand.vmem [shape: f32[2,32,162], index: 1, kind: input, shape index: {}]
  %s2 = inlined_call_operand.vmem [shape: f32[1,32], index: 2, kind: input, shape index: {}]
  %s3 = inlined_call_operand.vmem [shape: f32[162,2], index: 3, kind: input, shape index: {}]
  %s4 = inlined_call_operand.vmem [shape: f32[162,2], index: 4, kind: input, shape index: {}]
  %s5 = inlined_call_operand.vmem [shape: f32[1,2], index: 5, kind: input, shape index: {}]
  %s6 = inlined_call_operand.hbm [shape: f32[2,1,2], index: 6, kind: output, shape index: {}]
  %s7 = sld [smem:[#allocation0]]
  $region57: #{vertex_disease_classifiers.1} parent=0
    _
  %s9 = ssub.s32 1, %s7
  %s10 = scalar_select 0, %s9, %s7
  $region1: #{vertex_disease_classifiers.1} parent=0
    #allocation2 [shape = 'u8[1024]{0}', space=vmem, size = 0x400, scoped, tag = 'output window, operand 0']
    #allocation3 [shape = 's32[2]{0}', space=sflag, size = 0x8, scoped, tag = 'scoped memory for vertex_disease_classifiers.1']
    %11 = vsyncpa [#allocation3], 0
    %s12 = scalar_lea.sflag [#allocation3], 1
    %13 = vsyncpa %s12, 0
    loop: start=0, step=1, limit=4
    $region2: #{vertex_disease_classifiers.1} parent=1 // loop_pre_header
      _
    $region3: #{vertex_disease_classifiers.1} parent=1 // loop_header
      %s15 = sphi 0, %s19
      %p16 = scmp.ge.s32.totalorder %s15, 4
      %s25 = sphi 0, %s27
      %s28 = sphi 0, %s25
      %s29 = sphi 0, %s28
      %s45 = sphi 0, %s29
      %s51 = sphi 0, %s53
      %s54 = sphi 0, %s51
      %s55 = sphi 0, %s54
      %s71 = sphi 0, %s55
      %s75 = sphi 0, %s75
      %s77 = sphi 0, %s75
      %s78 = sphi 0, %s77
      %s92 = sphi 0, %s78
      %s96 = sphi 0, %s96
      %s98 = sphi 0, %s96
      %s99 = sphi 0, %s98
      %s113 = sphi 0, %s99
      %s117 = sphi 0, %s117
      %s119 = sphi 0, %s117
      %s120 = sphi 0, %s119
      %s134 = sphi 0, %s120
      %s138 = sphi 0, %s138
      %s140 = sphi 0, %s138
      %s141 = sphi 0, %s140
      %s155 = sphi 0, %s141
      %s161 = sphi 0, %s163
      %s164 = sphi 0, %s161
      %s165 = sphi 0, %s164
      %s181 = sphi 0, %s165
    $region4: #{vertex_disease_classifiers.1} parent=1 // loop_header_branch
      %18 = sbr.rel (%p16) target = $region8
    $region5: #{vertex_disease_classifiers.1} parent=1 // loop_body
      %s20 = ssub.s32 %s15, 1
      %s21 = ssub.s32 %s15, 2
      %s22 = sadd.s32 %s15, 1
      %s23 = ssub.s32 %s15, %s22
      %p24 = scmp.eq.s32.totalorder %s23, 0
      %s26 = sadd.s32 %s25, 1
      %s27 = scalar_select %p24, %s25, %s26
      %p30 = pneg %p24
      %p31 = scmp.eq.s32.totalorder %s15, 1
      %p32 = por %p30, %p31
      %p33 = scmp.ne.s32.totalorder %s25, %s28
      %p34 = scmp.eq.s32.totalorder %s15, 0
      %p35 = por %p33, %p34
      %p36 = scmp.ne.s32.totalorder %s25, %s28
      %p37 = scmp.eq.s32.totalorder %s20, 1
      %p38 = por %p36, %p37
      %p39 = scmp.ne.s32.totalorder %s28, %s29
      %p40 = scmp.eq.s32.totalorder %s20, 0
      %p41 = por %p39, %p40
      %p42 = scmp.ne.s32.totalorder %s28, %s29
      %p43 = scmp.eq.s32.totalorder %s21, 1
      %p44 = por %p42, %p43
      %p46 = scmp.ne.s32.totalorder %s29, %s45
      %p47 = scmp.eq.s32.totalorder %s21, 0
      %p48 = por %p46, %p47
      %s49 = ssub.s32 %s15, %s22
      %p50 = scmp.eq.s32.totalorder %s49, 0
      %s52 = sadd.s32 %s51, 1
      %s53 = scalar_select %p50, %s51, %s52
      %p56 = pneg %p50
      %p57 = scmp.eq.s32.totalorder %s15, 1
      %p58 = por %p56, %p57
      %p59 = scmp.ne.s32.totalorder %s51, %s54
      %p60 = scmp.eq.s32.totalorder %s15, 0
      %p61 = por %p59, %p60
      %p62 = scmp.ne.s32.totalorder %s51, %s54
      %p63 = scmp.eq.s32.totalorder %s20, 1
      %p64 = por %p62, %p63
      %p65 = scmp.ne.s32.totalorder %s54, %s55
      %p66 = scmp.eq.s32.totalorder %s20, 0
      %p67 = por %p65, %p66
      %p68 = scmp.ne.s32.totalorder %s54, %s55
      %p69 = scmp.eq.s32.totalorder %s21, 1
      %p70 = por %p68, %p69
      %p72 = scmp.ne.s32.totalorder %s55, %s71
      %p73 = scmp.eq.s32.totalorder %s21, 0
      %p74 = por %p72, %p73
      %s76 = sadd.s32 %s75, 1
      %p79 = scmp.eq.s32.totalorder %s15, 1
      %p80 = scmp.ne.s32.totalorder %s75, %s77
      %p81 = scmp.eq.s32.totalorder %s15, 0
      %p82 = por %p80, %p81
      %p83 = scmp.ne.s32.totalorder %s75, %s77
      %p84 = scmp.eq.s32.totalorder %s20, 1
      %p85 = por %p83, %p84
      %p86 = scmp.ne.s32.totalorder %s77, %s78
      %p87 = scmp.eq.s32.totalorder %s20, 0
      %p88 = por %p86, %p87
      %p89 = scmp.ne.s32.totalorder %s77, %s78
      %p90 = scmp.eq.s32.totalorder %s21, 1
      %p91 = por %p89, %p90
      %p93 = scmp.ne.s32.totalorder %s78, %s92
      %p94 = scmp.eq.s32.totalorder %s21, 0
      %p95 = por %p93, %p94
      %s97 = sadd.s32 %s96, 1
      %p100 = scmp.eq.s32.totalorder %s15, 1
      %p101 = scmp.ne.s32.totalorder %s96, %s98
      %p102 = scmp.eq.s32.totalorder %s15, 0
      %p103 = por %p101, %p102
      %p104 = scmp.ne.s32.totalorder %s96, %s98
      %p105 = scmp.eq.s32.totalorder %s20, 1
      %p106 = por %p104, %p105
      %p107 = scmp.ne.s32.totalorder %s98, %s99
      %p108 = scmp.eq.s32.totalorder %s20, 0
      %p109 = por %p107, %p108
      %p110 = scmp.ne.s32.totalorder %s98, %s99
      %p111 = scmp.eq.s32.totalorder %s21, 1
      %p112 = por %p110, %p111
      %p114 = scmp.ne.s32.totalorder %s99, %s113
      %p115 = scmp.eq.s32.totalorder %s21, 0
      %p116 = por %p114, %p115
      %s118 = sadd.s32 %s117, 1
      %p121 = scmp.eq.s32.totalorder %s15, 1
      %p122 = scmp.ne.s32.totalorder %s117, %s119
      %p123 = scmp.eq.s32.totalorder %s15, 0
      %p124 = por %p122, %p123
      %p125 = scmp.ne.s32.totalorder %s117, %s119
      %p126 = scmp.eq.s32.totalorder %s20, 1
      %p127 = por %p125, %p126
      %p128 = scmp.ne.s32.totalorder %s119, %s120
      %p129 = scmp.eq.s32.totalorder %s20, 0
      %p130 = por %p128, %p129
      %p131 = scmp.ne.s32.totalorder %s119, %s120
      %p132 = scmp.eq.s32.totalorder %s21, 1
      %p133 = por %p131, %p132
      %p135 = scmp.ne.s32.totalorder %s120, %s134
      %p136 = scmp.eq.s32.totalorder %s21, 0
      %p137 = por %p135, %p136
      %s139 = sadd.s32 %s138, 1
      %p142 = scmp.eq.s32.totalorder %s15, 1
      %p143 = scmp.ne.s32.totalorder %s138, %s140
      %p144 = scmp.eq.s32.totalorder %s15, 0
      %p145 = por %p143, %p144
      %p146 = scmp.ne.s32.totalorder %s138, %s140
      %p147 = scmp.eq.s32.totalorder %s20, 1
      %p148 = por %p146, %p147
      %p149 = scmp.ne.s32.totalorder %s140, %s141
      %p150 = scmp.eq.s32.totalorder %s20, 0
      %p151 = por %p149, %p150
      %p152 = scmp.ne.s32.totalorder %s140, %s141
      %p153 = scmp.eq.s32.totalorder %s21, 1
      %p154 = por %p152, %p153
      %p156 = scmp.ne.s32.totalorder %s141, %s155
      %p157 = scmp.eq.s32.totalorder %s21, 0
      %p158 = por %p156, %p157
      %s159 = ssub.s32 %s15, %s22
      %p160 = scmp.eq.s32.totalorder %s159, 0
      %s162 = sadd.s32 %s161, 1
      %s163 = scalar_select %p160, %s161, %s162
      %p166 = pneg %p160
      %p167 = scmp.eq.s32.totalorder %s15, 1
      %p168 = por %p166, %p167
      %p169 = scmp.ne.s32.totalorder %s161, %s164
      %p170 = scmp.eq.s32.totalorder %s15, 0
      %p171 = por %p169, %p170
      %p172 = scmp.ne.s32.totalorder %s161, %s164
      %p173 = scmp.eq.s32.totalorder %s20, 1
      %p174 = por %p172, %p173
      %p175 = scmp.ne.s32.totalorder %s164, %s165
      %p176 = scmp.eq.s32.totalorder %s20, 0
      %p177 = por %p175, %p176
      %p178 = scmp.ne.s32.totalorder %s164, %s165
      %p179 = scmp.eq.s32.totalorder %s21, 1
      %p180 = por %p178, %p179
      %p182 = scmp.ne.s32.totalorder %s165, %s181
      %p183 = scmp.eq.s32.totalorder %s21, 0
      %p184 = por %p182, %p183
      %p185 = scmp.le.s32.totalorder 1, %s15
      %p186 = scmp.lt.s32.totalorder %s15, 3
      %p187 = pnand %p185, %p186
      %p188 = pneg %p187
      // Predicated region
      $region9: #{vertex_disease_classifiers.1} parent=5 // pred_check
        _
      $region10: #{vertex_disease_classifiers.1} parent=5 // pred_check_branch
        %190 = sbr.rel (%p187) target = $region12
      $region11: #{vertex_disease_classifiers.1} parent=5 // pred_region
        %s191 = ssub.s32 %s15, 1
        // Predicated region
        $region13: #{vertex_disease_classifiers.1} parent=11 // pred_check
          %p192 = pneg %p88
        $region14: #{vertex_disease_classifiers.1} parent=11 // pred_check_branch
          %194 = sbr.rel (%p192) target = $region16
        $region15: #{vertex_disease_classifiers.1} parent=11 // pred_region
          _
        $region16: #{vertex_disease_classifiers.1} parent=11 // pred_fallthru
          _
        // Predicated region
        $region17: #{vertex_disease_classifiers.1} parent=11 // pred_check
          %p195 = pneg %p109
        $region18: #{vertex_disease_classifiers.1} parent=11 // pred_check_branch
          %197 = sbr.rel (%p195) target = $region20
        $region19: #{vertex_disease_classifiers.1} parent=11 // pred_region
          _
        $region20: #{vertex_disease_classifiers.1} parent=11 // pred_fallthru
          _
        // Predicated region
        $region21: #{vertex_disease_classifiers.1} parent=11 // pred_check
          %p198 = pneg %p130
        $region22: #{vertex_disease_classifiers.1} parent=11 // pred_check_branch
          %200 = sbr.rel (%p198) target = $region24
        $region23: #{vertex_disease_classifiers.1} parent=11 // pred_region
          _
        $region24: #{vertex_disease_classifiers.1} parent=11 // pred_fallthru
          _
        // Predicated region
        $region25: #{vertex_disease_classifiers.1} parent=11 // pred_check
          %p201 = pneg %p151
        $region26: #{vertex_disease_classifiers.1} parent=11 // pred_check_branch
          %203 = sbr.rel (%p201) target = $region28
        $region27: #{vertex_disease_classifiers.1} parent=11 // pred_region
          _
        $region28: #{vertex_disease_classifiers.1} parent=11 // pred_fallthru
          _
      $region12: #{vertex_disease_classifiers.1} parent=5 // pred_fallthru
        _
      %p204 = scmp.lt.s32.totalorder %s15, 2
      // Predicated region
      $region29: #{vertex_disease_classifiers.1} parent=5 // pred_check
        %p205 = pneg %p204
      $region30: #{vertex_disease_classifiers.1} parent=5 // pred_check_branch
        %207 = sbr.rel (%p205) target = $region32
      $region31: #{vertex_disease_classifiers.1} parent=5 // pred_region
        // Predicated region
        $region33: #{vertex_disease_classifiers.1} parent=31 // pred_check
          %p208 = pneg %p35
        $region34: #{vertex_disease_classifiers.1} parent=31 // pred_check_branch
          %210 = sbr.rel (%p208) target = $region36
        $region35: #{vertex_disease_classifiers.1} parent=31 // pred_region
          %p211 = scmp.lt.s32.totalorder %s15, 1
          %s212 = scalar_select %p211, %s15, 1
          %s213 = smul.addr %s212, 8
          %s214 = smul.addr %s213, 8
          %s215 = scalar_lea.vmem %s0, %s214
        $region36: #{vertex_disease_classifiers.1} parent=31 // pred_fallthru
          _
        // Predicated region
        $region37: #{vertex_disease_classifiers.1} parent=31 // pred_check
          %p216 = pneg %p61
        $region38: #{vertex_disease_classifiers.1} parent=31 // pred_check_branch
          %218 = sbr.rel (%p216) target = $region40
        $region39: #{vertex_disease_classifiers.1} parent=31 // pred_region
          %p219 = scmp.lt.s32.totalorder %s15, 1
          %s220 = scalar_select %p219, %s15, 1
          %s221 = smul.addr %s220, 8
          %s222 = smul.addr %s221, 8
          %s223 = scalar_lea.vmem %s1, %s222
        $region40: #{vertex_disease_classifiers.1} parent=31 // pred_fallthru
          _
      $region32: #{vertex_disease_classifiers.1} parent=5 // pred_fallthru
        _
      %p224 = scmp.le.s32.totalorder 1, %s15
      %p225 = scmp.lt.s32.totalorder %s15, 3
      %p226 = pnand %p224, %p225
      %p227 = pneg %p226
      // Predicated region
      $region41: #{vertex_disease_classifiers.1} parent=5 // pred_check
        _
      $region42: #{vertex_disease_classifiers.1} parent=5 // pred_check_branch
        %229 = sbr.rel (%p226) target = $region44
      $region43: #{vertex_disease_classifiers.1} parent=5 // pred_region
        %s230 = ssub.s32 %s15, 1
        %p231 = scmp.lt.s32.totalorder %s20, 1
        %s232 = scalar_select %p231, %s20, 1
        %s233 = smul.addr %s232, 8
        %s234 = smul.addr %s233, 8
        %s235 = scalar_lea.vmem %s0, %s234
        %p236 = pneg %p41
        %p237 = pneg %p38
        %p238 = scmp.lt.s32.totalorder %s20, 1
        %s239 = scalar_select %p238, %s20, 1
        %s240 = smul.addr %s239, 8
        %s241 = smul.addr %s240, 8
        %s242 = scalar_lea.vmem %s1, %s241
        %p243 = pneg %p67
        %p244 = pneg %p64
        %p245 = pneg %p88
        %p246 = pneg %p85
        %p247 = pneg %p109
        %p248 = pneg %p106
        %p249 = pneg %p130
        %p250 = pneg %p127
        %p251 = pneg %p151
        %p252 = pneg %p148
        %p253 = pneg %p177
        %p254 = pneg %p174
        %s255 = sand.u32 %s164, 1
        %s256 = scalar_lea.sflag [#allocation3], %s255
        %s257 = sand.u32 %s164, 1
        %s258 = scalar_lea.vmem [#allocation2], %s257
        %p259 = scmp.lt.s32.totalorder %s20, 1
        %s260 = scalar_select %p259, %s20, 1
        %s261 = smul.addr %s260, 8
        %s262 = smul.addr %s261, 8
        %s263 = scalar_lea.vmem %s0, %s262
        %p264 = scmp.lt.s32.totalorder %s20, 1
        %s265 = scalar_select %p264, %s20, 1
        %s266 = smul.addr %s265, 8
        %s267 = smul.addr %s266, 8
        %s268 = scalar_lea.vmem %s1, %s267
        %v269 = vld [vmem:[%s263] sm:$0xff]
        %v270 = vld [vmem:[%s263 + $0x8] sm:$0xff]
        %v271 = vld [vmem:[%s263 + $0x10] sm:$0xff]
        %v272 = vld [vmem:[%s263 + $0x18] sm:$0xff]
        %v273 = vld [vmem:[%s263 + $0x20] sm:$0xff]
        %v274 = vld [vmem:[%s263 + $0x28] sm:$0xff]
        %v275 = vld [vmem:[%s263 + $0x30] sm:$0xff]
        %v276 = vld [vmem:[%s263 + $0x38] sm:$0xff]
        %v277 = vld [vmem:[%s268] sm:$0xff]
        %v278 = vld [vmem:[%s268 + $0x8] sm:$0xff]
        %v279 = vld [vmem:[%s268 + $0x10] sm:$0xff]
        %v280 = vld [vmem:[%s268 + $0x18] sm:$0xff]
        %v281 = vld [vmem:[%s268 + $0x20] sm:$0xff]
        %v282 = vld [vmem:[%s268 + $0x28] sm:$0xff]
        %v283 = vld [vmem:[%s268 + $0x30] sm:$0xff]
        %v284 = vld [vmem:[%s268 + $0x38] sm:$0xff]
        %v285 = vld [vmem:[%s2] sm:$0x1]
        %vm286 = vcmask 261120
        %v288 = vsel %vm286, %v285, 0
        %290 = vmatpush.msra.mxu0 0.0
        %291 = vmatpush.msra.mxu0 0.0
        %292 = vmatpush.msra.mxu0 0.0
        %293 = vmatpush.msra.mxu0 0.0
        %294 = vmatpush.msra.mxu0 0.0
        %295 = vmatpush.msra.mxu0 0.0
        %296 = vmatpush.msra.mxu0 0.0
        %297 = vmatpush.msra.mxu0 0.0
        %298 = vmatpush.msra.mxu0 0.0
        %299 = vmatpush.msra.mxu0 0.0
        %300 = vmatpush.msra.mxu0 0.0
        %301 = vmatpush.msra.mxu0 0.0
        %302 = vmatpush.msra.mxu0 %v275
        %303 = vmatpush.msra.mxu0 %v273
        %304 = vmatpush.msra.mxu0 %v271
        %305 = vmatpush.msra.mxu0 %v269
        %306 = vmatmul.f32.gmra.mxu0 %v288
        %v307 = vpop.f32.mrf.mxu0
        %v308 = vadd.f32 0.0, %v307
        %309 = vdwg.mxu0
        %310 = vmatpush.msra.mxu0 0.0
        %311 = vmatpush.msra.mxu0 0.0
        %312 = vmatpush.msra.mxu0 0.0
        %313 = vmatpush.msra.mxu0 0.0
        %314 = vmatpush.msra.mxu0 0.0
        %315 = vmatpush.msra.mxu0 0.0
        %316 = vmatpush.msra.mxu0 0.0
        %317 = vmatpush.msra.mxu0 0.0
        %318 = vmatpush.msra.mxu0 0.0
        %319 = vmatpush.msra.mxu0 0.0
        %320 = vmatpush.msra.mxu0 0.0
        %321 = vmatpush.msra.mxu0 0.0
        %322 = vmatpush.msra.mxu0 %v276
        %323 = vmatpush.msra.mxu0 %v274
        %324 = vmatpush.msra.mxu0 %v272
        %325 = vmatpush.msra.mxu0 %v270
        %326 = vmatmul.f32.gmra.mxu0 %v288
        %v327 = vpop.f32.mrf.mxu0
        %v328 = vadd.f32 0.0, %v327
        %329 = vdwg.mxu0
        %330 = vmatpush.msra.mxu0 0.0
        %331 = vmatpush.msra.mxu0 0.0
        %332 = vmatpush.msra.mxu0 0.0
        %333 = vmatpush.msra.mxu0 0.0
        %334 = vmatpush.msra.mxu0 0.0
        %335 = vmatpush.msra.mxu0 0.0
        %336 = vmatpush.msra.mxu0 0.0
        %337 = vmatpush.msra.mxu0 0.0
        %338 = vmatpush.msra.mxu0 0.0
        %339 = vmatpush.msra.mxu0 0.0
        %340 = vmatpush.msra.mxu0 0.0
        %341 = vmatpush.msra.mxu0 0.0
        %342 = vmatpush.msra.mxu0 %v283
        %343 = vmatpush.msra.mxu0 %v281
        %344 = vmatpush.msra.mxu0 %v279
        %345 = vmatpush.msra.mxu0 %v277
        %346 = vmatmul.f32.gmra.mxu0 %v288
        %v347 = vpop.f32.mrf.mxu0
        %v348 = vadd.f32 0.0, %v347
        %349 = vdwg.mxu0
        %350 = vmatpush.msra.mxu0 0.0
        %351 = vmatpush.msra.mxu0 0.0
        %352 = vmatpush.msra.mxu0 0.0
        %353 = vmatpush.msra.mxu0 0.0
        %354 = vmatpush.msra.mxu0 0.0
        %355 = vmatpush.msra.mxu0 0.0
        %356 = vmatpush.msra.mxu0 0.0
        %357 = vmatpush.msra.mxu0 0.0
        %358 = vmatpush.msra.mxu0 0.0
        %359 = vmatpush.msra.mxu0 0.0
        %360 = vmatpush.msra.mxu0 0.0
        %361 = vmatpush.msra.mxu0 0.0
        %362 = vmatpush.msra.mxu0 %v284
        %363 = vmatpush.msra.mxu0 %v282
        %364 = vmatpush.msra.mxu0 %v280
        %365 = vmatpush.msra.mxu0 %v278
        %366 = vmatmul.f32.gmra.mxu0 %v288
        %v367 = vpop.f32.mrf.mxu0
        %v368 = vadd.f32 0.0, %v367
        %369 = vdwg.mxu0
        %v370 = vld [vmem:[%s3] sm:$0xff]
        %v371 = vld [vmem:[%s3 + $0x8] sm:$0xff]
        %v372 = vld [vmem:[%s3 + $0x10] sm:$0xff]
        %v373 = vld [vmem:[%s3 + $0x18] sm:$0xff]
        %v374 = vld [vmem:[%s3 + $0x20] sm:$0xff]
        %v375 = vld [vmem:[%s3 + $0x28] sm:$0xff]
        %v376 = vld [vmem:[%s3 + $0x30] sm:$0xff]
        %v377 = vld [vmem:[%s3 + $0x38] sm:$0xff]
        %v378 = vld [vmem:[%s3 + $0x40] sm:$0xff]
        %v379 = vld [vmem:[%s3 + $0x48] sm:$0xff]
        %v380 = vld [vmem:[%s3 + $0x50] sm:$0xff]
        %v381 = vld [vmem:[%s3 + $0x58] sm:$0xff]
        %v382 = vld [vmem:[%s3 + $0x60] sm:$0xff]
        %v383 = vld [vmem:[%s3 + $0x68] sm:$0xff]
        %v384 = vld [vmem:[%s3 + $0x70] sm:$0xff]
        %v385 = vld [vmem:[%s3 + $0x78] sm:$0xff]
        %v386 = vld [vmem:[%s3 + $0x80] sm:$0xff]
        %v387 = vld [vmem:[%s3 + $0x88] sm:$0xff]
        %v388 = vld [vmem:[%s3 + $0x90] sm:$0xff]
        %v389 = vld [vmem:[%s3 + $0x98] sm:$0xff]
        %v390 = vld [vmem:[%s3 + $0xa0] sm:$0x3]
        %v391 = vld [vmem:[%s4] sm:$0xff]
        %v392 = vld [vmem:[%s4 + $0x8] sm:$0xff]
        %v393 = vld [vmem:[%s4 + $0x10] sm:$0xff]
        %v394 = vld [vmem:[%s4 + $0x18] sm:$0xff]
        %v395 = vld [vmem:[%s4 + $0x20] sm:$0xff]
        %v396 = vld [vmem:[%s4 + $0x28] sm:$0xff]
        %v397 = vld [vmem:[%s4 + $0x30] sm:$0xff]
        %v398 = vld [vmem:[%s4 + $0x38] sm:$0xff]
        %v399 = vld [vmem:[%s4 + $0x40] sm:$0xff]
        %v400 = vld [vmem:[%s4 + $0x48] sm:$0xff]
        %v401 = vld [vmem:[%s4 + $0x50] sm:$0xff]
        %v402 = vld [vmem:[%s4 + $0x58] sm:$0xff]
        %v403 = vld [vmem:[%s4 + $0x60] sm:$0xff]
        %v404 = vld [vmem:[%s4 + $0x68] sm:$0xff]
        %v405 = vld [vmem:[%s4 + $0x70] sm:$0xff]
        %v406 = vld [vmem:[%s4 + $0x78] sm:$0xff]
        %v407 = vld [vmem:[%s4 + $0x80] sm:$0xff]
        %v408 = vld [vmem:[%s4 + $0x88] sm:$0xff]
        %v409 = vld [vmem:[%s4 + $0x90] sm:$0xff]
        %v410 = vld [vmem:[%s4 + $0x98] sm:$0xff]
        %v411 = vld [vmem:[%s4 + $0xa0] sm:$0x3]
        %vm412 = vcmask 277504
        %v414 = vsel %vm412, %v368, 0
        %vm416 = vcmask 1041408
        %v418 = vsel %vm416, %v411, 0
        %420 = vmatpush.msra.mxu0 %v406
        %421 = vmatpush.msra.mxu0 %v405
        %422 = vmatpush.msra.mxu0 %v404
        %423 = vmatpush.msra.mxu0 %v403
        %424 = vmatpush.msra.mxu0 %v402
        %425 = vmatpush.msra.mxu0 %v401
        %426 = vmatpush.msra.mxu0 %v400
        %427 = vmatpush.msra.mxu0 %v399
        %428 = vmatpush.msra.mxu0 %v398
        %429 = vmatpush.msra.mxu0 %v397
        %430 = vmatpush.msra.mxu0 %v396
        %431 = vmatpush.msra.mxu0 %v395
        %432 = vmatpush.msra.mxu0 %v394
        %433 = vmatpush.msra.mxu0 %v393
        %434 = vmatpush.msra.mxu0 %v392
        %435 = vmatpush.msra.mxu0 %v391
        %436 = vmatmul.f32.gmra.mxu0 %v348
        %v437 = vpop.f32.mrf.mxu0
        %v438 = vadd.f32 0.0, %v437
        %439 = vdwg.mxu0
        %440 = vmatpush.msra.mxu0 0.0
        %441 = vmatpush.msra.mxu0 0.0
        %442 = vmatpush.msra.mxu0 0.0
        %443 = vmatpush.msra.mxu0 0.0
        %444 = vmatpush.msra.mxu0 0.0
        %445 = vmatpush.msra.mxu0 0.0
        %446 = vmatpush.msra.mxu0 0.0
        %447 = vmatpush.msra.mxu0 0.0
        %448 = vmatpush.msra.mxu0 0.0
        %449 = vmatpush.msra.mxu0 0.0
        %450 = vmatpush.msra.mxu0 0.0
        %451 = vmatpush.msra.mxu0 %v418
        %452 = vmatpush.msra.mxu0 %v410
        %453 = vmatpush.msra.mxu0 %v409
        %454 = vmatpush.msra.mxu0 %v408
        %455 = vmatpush.msra.mxu0 %v407
        %456 = vmatmul.f32.gmra.mxu0 %v414
        %v457 = vpop.f32.mrf.mxu0
        %v458 = vadd.f32 %v438, %v457
        %459 = vdwg.mxu0
        %v461 = vsel %vm412, %v328, 0
        %v464 = vsel %vm416, %v390, 0
        %466 = vmatpush.msra.mxu0 %v385
        %467 = vmatpush.msra.mxu0 %v384
        %468 = vmatpush.msra.mxu0 %v383
        %469 = vmatpush.msra.mxu0 %v382
        %470 = vmatpush.msra.mxu0 %v381
        %471 = vmatpush.msra.mxu0 %v380
        %472 = vmatpush.msra.mxu0 %v379
        %473 = vmatpush.msra.mxu0 %v378
        %474 = vmatpush.msra.mxu0 %v377
        %475 = vmatpush.msra.mxu0 %v376
        %476 = vmatpush.msra.mxu0 %v375
        %477 = vmatpush.msra.mxu0 %v374
        %478 = vmatpush.msra.mxu0 %v373
        %479 = vmatpush.msra.mxu0 %v372
        %480 = vmatpush.msra.mxu0 %v371
        %481 = vmatpush.msra.mxu0 %v370
        %482 = vmatmul.f32.gmra.mxu0 %v308
        %v483 = vpop.f32.mrf.mxu0
        %v484 = vadd.f32 %v458, %v483
        %485 = vdwg.mxu0
        %486 = vmatpush.msra.mxu0 0.0
        %487 = vmatpush.msra.mxu0 0.0
        %488 = vmatpush.msra.mxu0 0.0
        %489 = vmatpush.msra.mxu0 0.0
        %490 = vmatpush.msra.mxu0 0.0
        %491 = vmatpush.msra.mxu0 0.0
        %492 = vmatpush.msra.mxu0 0.0
        %493 = vmatpush.msra.mxu0 0.0
        %494 = vmatpush.msra.mxu0 0.0
        %495 = vmatpush.msra.mxu0 0.0
        %496 = vmatpush.msra.mxu0 0.0
        %497 = vmatpush.msra.mxu0 %v464
        %498 = vmatpush.msra.mxu0 %v389
        %499 = vmatpush.msra.mxu0 %v388
        %500 = vmatpush.msra.mxu0 %v387
        %501 = vmatpush.msra.mxu0 %v386
        %502 = vmatmul.f32.gmra.mxu0 %v461
        %v503 = vpop.f32.mrf.mxu0
        %v504 = vadd.f32 %v484, %v503
        %505 = vdwg.mxu0
        %v506 = vld [vmem:[%s5] sm:$0x1]
        %v507 = vadd.f32 %v504, %v506
        %vm508 = vcmask 8192
        %509 = vst.msk [vmem:[%s258] sm:$0x1] %vm508, %v507
        %s510 = sand.u32 %s164, 1
        %s511 = scalar_lea.sflag [#allocation3], %s510
        %s512 = sand.u32 %s164, 1
        %s513 = scalar_lea.vmem [#allocation2], %s512
        // Predicated region
        $region45: #{vertex_disease_classifiers.1} parent=43 // pred_check
          %p514 = pneg %p174
        $region46: #{vertex_disease_classifiers.1} parent=43 // pred_check_branch
          %516 = sbr.rel (%p514) target = $region48
        $region47: #{vertex_disease_classifiers.1} parent=43 // pred_region
          %518 = vsyncadd %s511, 0
          %s519 = scalar_lea.hbm %s6, %s20
          %s521 = sshll.u32 %s513, 4
          %s522 = int_to_ptr.vmem [resolvable:$true] %s521
          %s523 = sshll.u32 %s519, 4
          %s524 = int_to_ptr.hbm [resolvable:$true] %s523
          %526 = dma.vmem_to_hbm [thread:$0]  %s522, 16, %s524, %s511
        $region48: #{vertex_disease_classifiers.1} parent=43 // pred_fallthru
          _
      $region44: #{vertex_disease_classifiers.1} parent=5 // pred_fallthru
        _
      %p527 = scmp.le.s32.totalorder 2, %s15
      // Predicated region
      $region49: #{vertex_disease_classifiers.1} parent=5 // pred_check
        %p528 = pneg %p527
      $region50: #{vertex_disease_classifiers.1} parent=5 // pred_check_branch
        %530 = sbr.rel (%p528) target = $region52
      $region51: #{vertex_disease_classifiers.1} parent=5 // pred_region
        %s531 = ssub.s32 %s15, 2
        // Predicated region
        $region53: #{vertex_disease_classifiers.1} parent=51 // pred_check
          %p532 = pneg %p180
        $region54: #{vertex_disease_classifiers.1} parent=51 // pred_check_branch
          %534 = sbr.rel (%p532) target = $region56
        $region55: #{vertex_disease_classifiers.1} parent=51 // pred_region
          %s535 = sand.u32 %s165, 1
          %s536 = scalar_lea.sflag [#allocation3], %s535
          %s537 = sand.u32 %s165, 1
          %s538 = scalar_lea.vmem [#allocation2], %s537
          %540 = dma.done %s536, 16
        $region56: #{vertex_disease_classifiers.1} parent=51 // pred_fallthru
          _
      $region52: #{vertex_disease_classifiers.1} parent=5 // pred_fallthru
        _
    $region6: #{vertex_disease_classifiers.1} parent=1 // loop_footer
      %s19 = sadd.s32 1, %s15
    $region7: #{vertex_disease_classifiers.1} parent=1 // loop_footer_branch
      %14 = sbr.rel target = $region3
    $region8: #{vertex_disease_classifiers.1} parent=1 // loop_exit
      _
    %541 = vsyncpa [#allocation3], 1
    %s542 = scalar_lea.sflag [#allocation3], 1
    %543 = vsyncpa %s542, 1

</llo_original>
